<compile_context>
chip_gen: v7x
topology: tpu7x:2x2x1
jax: 0.10.0
libtpu: 0.0.40
codegen_flags: <defaults>
</compile_context>

<pallas_src>
import jax
import jax.numpy as jnp
from jax.experimental import pallas as pl
from jax.experimental.pallas import tpu as pltpu


def _pixel_to_position_kernel(x_ref, g_ref, out_ref):
    # x_ref  : (TB, HW) logits tile (native dtype, cast to f32 in-kernel)
    # g_ref  : (2, HW)  row 0 = gx (varies along H), row 1 = gy (along W)
    # out_ref: (TB, 2)  [:, 0] = expected x, [:, 1] = expected y
    s = x_ref[...].astype(jnp.float32)                       # (TB, HW)
    m = jnp.max(s, axis=-1, keepdims=True)                   # XLU, (TB, 1)
    e = jnp.exp(s - m)                                       # EUP, (TB, HW)

    gx = g_ref[0:1, :]                                       # (1, HW)
    gy = g_ref[1:2, :]                                       # (1, HW)

    sum_e = jnp.sum(e, axis=-1, keepdims=True)               # (TB, 1)
    sum_x = jnp.sum(e * gx, axis=-1, keepdims=True)          # VPU mul + XLU
    sum_y = jnp.sum(e * gy, axis=-1, keepdims=True)

    inv = 1.0 / sum_e          # exact; only TB values (approx vrcp too coarse)
    out = jnp.concatenate([sum_x * inv, sum_y * inv], axis=1)   # (TB, 2)
    out_ref[...] = out.astype(out_ref.dtype)


def _round_up(x: int, m: int) -> int:
    return ((x + m - 1) // m) * m


def _choose_batch_tile(batch: int, hw: int, itemsize: int) -> int:
    # Sublane alignment matched to the packed tile of the input dtype
    # (f32 -> 8 rows, bf16 -> 16, int8/fp8 -> 32) so loads stay dense.
    align = {1: 32, 2: 16}.get(itemsize, 8)
    # Per-row VMEM cost: double-buffered input tile + f32 in-kernel
    # temporaries (cast/exp and the grid-weighted products).
    per_row = 2 * hw * itemsize + 3 * hw * 4
    budget = 16 << 20                      # accounted bytes; limit set to 32 MiB
    rows = max(align, (budget // max(1, per_row)) // align * align)
    rows = min(rows, 8192)
    # Keep >= ~4 grid steps when the batch is big enough: both v7x TensorCores
    # get tiles and the pipeline has something to overlap with.
    min_tiles = 4
    if batch >= min_tiles * align:
        rows = min(rows, _round_up(pl.cdiv(batch, min_tiles), align))
    rows = min(rows, _round_up(batch, align))
    return max(rows, align)


def pixel_to_position(inp: jax.Array, size) -> jax.Array:
    """inp: (B, 1, H, W) float array; returns (B, 2) float32."""
    H, W = size
    B, C, h, w = inp.shape
    assert C == 1, "PixelToPosition expects a single channel"
    assert (h, w) == (H, W)
    assert H > 1 and W > 1, "grid normalization divides by (size - 1)"

    HW = H * W

    # Grid rows (same construction as the module's buffers). ~2 KiB constant;
    # jit the wrapper so this folds out of the per-call path.
    gx = jnp.arange(H, dtype=jnp.float32) / (H - 1) * 2.0 - 1.0   # along H
    gy = jnp.arange(W, dtype=jnp.float32) / (W - 1) * 2.0 - 1.0   # along W
    gx_flat = jnp.broadcast_to(gx[:, None], (H, W)).reshape(1, HW)
    gy_flat = jnp.broadcast_to(gy[None, :], (H, W)).reshape(1, HW)
    g = jnp.concatenate([gx_flat, gy_flat], axis=0)               # (2, HW)

    # Glue reshape: NCHW -> (B, HW), h-major / w-minor ('b c h w -> b c (h w)').
    x_flat = inp.reshape(B, HW)          # native dtype; f32 cast happens in-kernel

    tb = _choose_batch_tile(B, HW, x_flat.dtype.itemsize)
    n_tiles = pl.cdiv(B, tb)

    # TODO(synk): for very large H*W (>~16K) also tile the HW axis with an
    # online-softmax accumulator (flash-style, pl.when init/finalize); not
    # needed at Loci's latent spatial sizes.
    out = pl.pallas_call(
        _pixel_to_position_kernel,
        out_shape=jax.ShapeDtypeStruct((B, 2), jnp.float32),
        grid=(n_tiles,),
        in_specs=[
            pl.BlockSpec((tb, HW), lambda i: (i, 0)),
            pl.BlockSpec((2, HW), lambda i: (0, 0)),   # constant grid rows
        ],
        out_specs=pl.BlockSpec((tb, 2), lambda i: (i, 0)),
        compiler_params=pltpu.CompilerParams(
            dimension_semantics=("parallel",),          # shard batch tiles across TCs
            vmem_limit_bytes=32 << 20),                 # cover v5e's 16 MiB default
    )(x_flat, g)
    return out


pixel_to_position_jit = jax.jit(pixel_to_position, static_argnames=("size",))


def _reference(inp, size):
    H, W = size
    B = inp.shape[0]
    gx = jnp.arange(H, dtype=jnp.float32) / (H - 1) * 2.0 - 1.0
    gy = jnp.arange(W, dtype=jnp.float32) / (W - 1) * 2.0 - 1.0
    p = jax.nn.softmax(inp.reshape(B, H * W).astype(jnp.float32), axis=-1)
    p = p.reshape(B, 1, H, W)
    x = jnp.sum(p * gx[None, None, :, None], axis=(2, 3))
    y = jnp.sum(p * gy[None, None, None, :], axis=(2, 3))
    return jnp.concatenate([x, y], axis=1)


if __name__ == "__main__":
    B, C, H, W = 2, 1, 16, 16
    key = jax.random.PRNGKey(0)
    x = jax.random.normal(key, (B, C, H, W), dtype=jnp.float32)

    out = pixel_to_position_jit(x, size=(H, W))
    out = jax.block_until_ready(out)

    ref = _reference(x, (H, W))
    assert out.shape == (B, 2)
    assert jnp.allclose(out, ref, atol=1e-5, rtol=1e-5), (out, ref)
    print("KERNEL_OK")
</pallas_src>

<mosaic_0001>
module attributes {stable_mosaic.version = 11 : i64} {
  func.func @_pixel_to_position_kernel(%arg0: i32, %arg1: memref<8x256xf32, #tpu.memory_space<vmem>>, %arg2: memref<2x256xf32, #tpu.memory_space<vmem>>, %arg3: memref<8x2xf32, #tpu.memory_space<vmem>>) attributes {dimension_semantics = [#tpu.dimension_semantics<parallel>], iteration_bounds = array<i64: 1>, scalar_prefetch = 0 : i64, scratch_operands = 0 : i64, tpu.core_type = #tpu.core_type<tc>, window_params = [{transform_indices = @transform_0, window_bounds = array<i64: 8, 256>}, {pipeline_mode = #tpu.pipeline_mode<synchronous>, transform_indices = @transform_1, window_bounds = array<i64: 2, 256>}, {transform_indices = @transform_2, window_bounds = array<i64: 8, 2>}]} {
    %c0 = arith.constant 0 : index
    %c0_0 = arith.constant 0 : index
    %0 = vector.load %arg1[%c0, %c0_0] : memref<8x256xf32, #tpu.memory_space<vmem>>, vector<8x256xf32>
    %cst = arith.constant dense<0xFF800000> : vector<8xf32>
    %1 = vector.multi_reduction <maximumf>, %0, %cst [1] : vector<8x256xf32> to vector<8xf32>
    %2 = vector.shape_cast %1 : vector<8xf32> to vector<8x1xf32>
    %3 = vector.broadcast %2 : vector<8x1xf32> to vector<8x256xf32>
    %4 = arith.subf %0, %3 : vector<8x256xf32>
    %5 = math.exp %4 : vector<8x256xf32>
    %c0_1 = arith.constant 0 : index
    %c0_2 = arith.constant 0 : index
    %6 = vector.load %arg2[%c0_1, %c0_2] : memref<2x256xf32, #tpu.memory_space<vmem>>, vector<1x256xf32>
    %c1 = arith.constant 1 : index
    %c0_3 = arith.constant 0 : index
    %7 = vector.load %arg2[%c1, %c0_3] : memref<2x256xf32, #tpu.memory_space<vmem>>, vector<1x256xf32>
    %cst_4 = arith.constant dense<0.000000e+00> : vector<8xf32>
    %8 = vector.multi_reduction <add>, %5, %cst_4 [1] : vector<8x256xf32> to vector<8xf32>
    %9 = vector.shape_cast %8 : vector<8xf32> to vector<8x1xf32>
    %10 = vector.broadcast %6 : vector<1x256xf32> to vector<8x256xf32>
    %11 = arith.mulf %5, %10 : vector<8x256xf32>
    %cst_5 = arith.constant dense<0.000000e+00> : vector<8xf32>
    %12 = vector.multi_reduction <add>, %11, %cst_5 [1] : vector<8x256xf32> to vector<8xf32>
    %13 = vector.shape_cast %12 : vector<8xf32> to vector<8x1xf32>
    %14 = vector.broadcast %7 : vector<1x256xf32> to vector<8x256xf32>
    %15 = arith.mulf %5, %14 : vector<8x256xf32>
    %cst_6 = arith.constant dense<0.000000e+00> : vector<8xf32>
    %16 = vector.multi_reduction <add>, %15, %cst_6 [1] : vector<8x256xf32> to vector<8xf32>
    %17 = vector.shape_cast %16 : vector<8xf32> to vector<8x1xf32>
    %cst_7 = arith.constant 1.000000e+00 : f32
    %18 = vector.broadcast %cst_7 : f32 to vector<8x1xf32>
    %19 = arith.divf %18, %9 : vector<8x1xf32>
    %20 = arith.mulf %13, %19 : vector<8x1xf32>
    %21 = arith.mulf %17, %19 : vector<8x1xf32>
    %22 = tpu.concatenate %20, %21 in 1 : vector<8x1xf32>, vector<8x1xf32> -> vector<8x2xf32>
    %c0_8 = arith.constant 0 : index
    %c0_9 = arith.constant 0 : index
    %23 = vector.load %arg3[%c0_8, %c0_9] : memref<8x2xf32, #tpu.memory_space<vmem>>, vector<8x2xf32>
    tpu.vector_store %arg3[%c0_8, %c0_9], %22 {strides = array<i32>} : memref<8x2xf32, #tpu.memory_space<vmem>>, vector<8x2xf32>,
    return
  }
  func.func @transform_0(%arg0: i32) -> (i32, i32) {
    %c0_i32 = arith.constant 0 : i32
    %c0_i32_0 = arith.constant 0 : i32
    return %arg0, %c0_i32 : i32, i32
  }
  func.func @transform_1(%arg0: i32) -> (i32, i32) {
    %c0_i32 = arith.constant 0 : i32
    %c0_i32_0 = arith.constant 0 : i32
    %c0_i32_1 = arith.constant 0 : i32
    return %c0_i32, %c0_i32_0 : i32, i32
  }
  func.func @transform_2(%arg0: i32) -> (i32, i32) {
    %c0_i32 = arith.constant 0 : i32
    %c0_i32_0 = arith.constant 0 : i32
    return %arg0, %c0_i32 : i32, i32
  }
}

</mosaic_0001>

<llo_original>
// kernel: pixel_to_position.1
$region0: #{pixel_to_position.1}
  #allocation0 [shape = 'u32[]', space=smem, size = 0x4, offset = 0x4, fixed_abs, tag = 'smem constant byte address 0x4 - core index']
  #allocation1 [shape = 'u32[144,128]{1,0:T(1,128)}', space=vmem, size = 0x12000, scoped, tag = 'internal scratch']
  %s0 = inlined_call_operand.vmem [shape: f32[2,256], index: 0, kind: input, shape index: {}]
  %s1 = inlined_call_operand.vmem [shape: f32[2,256], index: 1, kind: input, shape index: {}]
  %s2 = inlined_call_operand.hbm [shape: f32[2,2], index: 2, kind: output, shape index: {}]
  %s3 = sld [smem:[#allocation0]]
  $region18: #{pixel_to_position.1} parent=0
    _
  %s5 = ssub.s32 1, %s3
  %s6 = scalar_select 0, %s5, %s3
  $region1: #{pixel_to_position.1} parent=0
    #allocation2 [shape = 'u8[4096]{0}', space=vmem, size = 0x1000, scoped, tag = 'output window, operand 0, single buffered']
    #allocation3 [shape = 's32[1]{0}', space=sflag, size = 0x4, scoped, tag = 'scoped memory for pixel_to_position.1']
    %7 = vsyncpa [#allocation3], 0
    // Predicated region
    $region2: #{pixel_to_position.1} parent=1 // pred_check
      _
    $region3: #{pixel_to_position.1} parent=1 // pred_check_branch
      %9 = sbr.rel (0) target = $region5
    $region4: #{pixel_to_position.1} parent=1 // pred_region
      _
    $region5: #{pixel_to_position.1} parent=1 // pred_fallthru
      _
    // Predicated region
    $region6: #{pixel_to_position.1} parent=1 // pred_check
      _
    $region7: #{pixel_to_position.1} parent=1 // pred_check_branch
      %11 = sbr.rel (0) target = $region9
    $region8: #{pixel_to_position.1} parent=1 // pred_region
      _
    $region9: #{pixel_to_position.1} parent=1 // pred_fallthru
      _
    %v12 = vld [vmem:[%s0] sm:$0xf]
    %v13 = vld [vmem:[%s0 + $0x4] sm:$0xf]
    %v14 = vld [vmem:[%s0 + $0x8] sm:$0xf]
    %v15 = vld [vmem:[%s0 + $0xc] sm:$0xf]
    %v20 = vcombine.low %v12, %v13
    %v21 = vcombine.low %v14, %v15
    %v23 = vunpack.c.l.s4 1983009808
    %v24 = vunpack.c.0.s8 %v23
    %v25 = vlaneseq
    %v26 = vshrl.u32 %v25, 7
    %v27 = vsub.s32 %v24, %v26
    %v28 = vrot.slane %v20, %v27
    %v30 = vunpack.c.l.s4 1983009808
    %v31 = vunpack.c.0.s8 %v30
    %v32 = vlaneseq
    %v33 = vshrl.u32 %v32, 7
    %v34 = vsub.s32 %v31, %v33
    %v35 = vrot.slane %v21, %v34
    %v36 = vcombine.low %v28, %v35
    %v37 = vcombine.high %v28, %v35
    %v40 = vmax.f32 %v36, %v37
    %41 = vmax.xlane.f32.xlu0 %v40
    %v42 = vpop.xlane.xlu0 %41
    %v45 = vunpack.c.l.s4 269488144
    %v46 = vunpack.c.0.s8 %v45
    %v47 = vlaneseq
    %v48 = vshrl.u32 %v47, 7
    %v49 = vsub.s32 %v46, %v48
    %v50 = vrot.slane %v42, %v49
    %v52 = vunpack.c.l.s4 842150450
    %v53 = vunpack.c.0.s8 %v52
    %v54 = vlaneseq
    %v55 = vshrl.u32 %v54, 7
    %v56 = vsub.s32 %v53, %v55
    %v57 = vrot.slane %v42, %v56
    %v59 = vunpack.c.l.s4 1414812756
    %v60 = vunpack.c.0.s8 %v59
    %v61 = vlaneseq
    %v62 = vshrl.u32 %v61, 7
    %v63 = vsub.s32 %v60, %v62
    %v64 = vrot.slane %v42, %v63
    %v66 = vunpack.c.l.s4 1987475062
    %v67 = vunpack.c.0.s8 %v66
    %v68 = vlaneseq
    %v69 = vshrl.u32 %v68, 7
    %v70 = vsub.s32 %v67, %v69
    %v71 = vrot.slane %v42, %v70
    %v76 = vsub.f32 %v12, %v50
    %v77 = vsub.f32 %v13, %v57
    %v78 = vsub.f32 %v14, %v64
    %v79 = vsub.f32 %v15, %v71
    %v80 = vmul.f32 %v76, 1.442695
    %v81 = vpow.pop %v80
    %v82 = vmul.f32 %v77, 1.442695
    %v83 = vpow.pop %v82
    %v84 = vmul.f32 %v78, 1.442695
    %v85 = vpow.pop %v84
    %v86 = vmul.f32 %v79, 1.442695
    %v87 = vpow.pop %v86
    %v88 = vld [vmem:[%s1] ss:$2 sm:$0x3]
    %s89 = scalar_lea.vmem %s1, 1
    %v90 = vld [vmem:[%s89] ss:$2 sm:$0x3]
    %v95 = vcombine.low %v81, %v83
    %v96 = vcombine.low %v85, %v87
    %v98 = vunpack.c.l.s4 1983009808
    %v99 = vunpack.c.0.s8 %v98
    %v100 = vlaneseq
    %v101 = vshrl.u32 %v100, 7
    %v102 = vsub.s32 %v99, %v101
    %v103 = vrot.slane %v95, %v102
    %v105 = vunpack.c.l.s4 1983009808
    %v106 = vunpack.c.0.s8 %v105
    %v107 = vlaneseq
    %v108 = vshrl.u32 %v107, 7
    %v109 = vsub.s32 %v106, %v108
    %v110 = vrot.slane %v96, %v109
    %v111 = vcombine.low %v103, %v110
    %v112 = vcombine.high %v103, %v110
    %v115 = vadd.f32 %v111, %v112
    %116 = vadd.xlane.f32.xlu0 %v115
    %v117 = vpop.xlane.xlu0 %116
    %v119 = vlaneseq
    %v120 = vshrl.u32 %v119, 7
    %v121 = vsub.s32 0, %v120
    %v122 = vrot.slane %v88, %v121
    %v123 = vlaneseq
    %v124 = vshrl.u32 %v123, 7
    %v125 = vsub.s32 1, %v124
    %v126 = vrot.slane %v88, %v125
    %v127 = vcombine.low %v122, %v126
    %v128 = vcombine.high %v122, %v126
    %v130 = vunpack.c.l.s4 1983009808
    %v131 = vunpack.c.0.s8 %v130
    %v132 = vlaneseq
    %v133 = vshrl.u32 %v132, 7
    %v134 = vsub.s32 %v131, %v133
    %v135 = vrot.slane %v127, %v134
    %v137 = vunpack.c.l.s4 1983009808
    %v138 = vunpack.c.0.s8 %v137
    %v139 = vlaneseq
    %v140 = vshrl.u32 %v139, 7
    %v141 = vsub.s32 %v138, %v140
    %v142 = vrot.slane %v128, %v141
    %v143 = vcombine.high %v135, %v135
    %v144 = vcombine.high %v142, %v142
    %v149 = vmul.f32 %v81, %v135
    %v150 = vmul.f32 %v83, %v143
    %v151 = vmul.f32 %v85, %v142
    %v152 = vmul.f32 %v87, %v144
    %v157 = vcombine.low %v149, %v150
    %v158 = vcombine.low %v151, %v152
    %v160 = vunpack.c.l.s4 1983009808
    %v161 = vunpack.c.0.s8 %v160
    %v162 = vlaneseq
    %v163 = vshrl.u32 %v162, 7
    %v164 = vsub.s32 %v161, %v163
    %v165 = vrot.slane %v157, %v164
    %v167 = vunpack.c.l.s4 1983009808
    %v168 = vunpack.c.0.s8 %v167
    %v169 = vlaneseq
    %v170 = vshrl.u32 %v169, 7
    %v171 = vsub.s32 %v168, %v170
    %v172 = vrot.slane %v158, %v171
    %v173 = vcombine.low %v165, %v172
    %v174 = vcombine.high %v165, %v172
    %v177 = vadd.f32 %v173, %v174
    %178 = vadd.xlane.f32.xlu0 %v177
    %v179 = vpop.xlane.xlu0 %178
    %v181 = vlaneseq
    %v182 = vshrl.u32 %v181, 7
    %v183 = vsub.s32 0, %v182
    %v184 = vrot.slane %v90, %v183
    %v185 = vlaneseq
    %v186 = vshrl.u32 %v185, 7
    %v187 = vsub.s32 1, %v186
    %v188 = vrot.slane %v90, %v187
    %v189 = vcombine.low %v184, %v188
    %v190 = vcombine.high %v184, %v188
    %v192 = vunpack.c.l.s4 1983009808
    %v193 = vunpack.c.0.s8 %v192
    %v194 = vlaneseq
    %v195 = vshrl.u32 %v194, 7
    %v196 = vsub.s32 %v193, %v195
    %v197 = vrot.slane %v189, %v196
    %v199 = vunpack.c.l.s4 1983009808
    %v200 = vunpack.c.0.s8 %v199
    %v201 = vlaneseq
    %v202 = vshrl.u32 %v201, 7
    %v203 = vsub.s32 %v200, %v202
    %v204 = vrot.slane %v190, %v203
    %v205 = vcombine.high %v197, %v197
    %v206 = vcombine.high %v204, %v204
    %v211 = vmul.f32 %v81, %v197
    %v212 = vmul.f32 %v83, %v205
    %v213 = vmul.f32 %v85, %v204
    %v214 = vmul.f32 %v87, %v206
    %v219 = vcombine.low %v211, %v212
    %v220 = vcombine.low %v213, %v214
    %v222 = vunpack.c.l.s4 1983009808
    %v223 = vunpack.c.0.s8 %v222
    %v224 = vlaneseq
    %v225 = vshrl.u32 %v224, 7
    %v226 = vsub.s32 %v223, %v225
    %v227 = vrot.slane %v219, %v226
    %v229 = vunpack.c.l.s4 1983009808
    %v230 = vunpack.c.0.s8 %v229
    %v231 = vlaneseq
    %v232 = vshrl.u32 %v231, 7
    %v233 = vsub.s32 %v230, %v232
    %v234 = vrot.slane %v220, %v233
    %v235 = vcombine.low %v227, %v234
    %v236 = vcombine.high %v227, %v234
    %v239 = vadd.f32 %v235, %v236
    %240 = vadd.xlane.f32.xlu0 %v239
    %v241 = vpop.xlane.xlu0 %240
    %v242 = vrcp.pop %v117
    %v243 = vmul.f32 1.0, %v242
    %v244 = vmul.f32 %v179, %v243
    %v245 = vmul.f32 %v241, %v243
    %vm246 = vcmask 7168
    %v247 = vsel %vm246, %v244, %v245
    %vm248 = vcmask 15360
    %249 = vst.msk [vmem:[#allocation2] sm:$0xff] %vm248, %v247
    // Predicated region
    $region10: #{pixel_to_position.1} parent=1 // pred_check
      _
    $region11: #{pixel_to_position.1} parent=1 // pred_check_branch
      %251 = sbr.rel (0) target = $region13
    $region12: #{pixel_to_position.1} parent=1 // pred_region
      %s253 = ssub.s32 128, 32
      %254 = vsyncadd [#allocation3], %s253
      %s255 = sshll.u32 [#allocation2], 4
      %s256 = int_to_ptr.vmem [resolvable:$true] %s255
      %261 = dma.vmem_to_hbm [thread:$0]  %s256, 32, %s2, [#allocation3], 32, 32, 2
    $region13: #{pixel_to_position.1} parent=1 // pred_fallthru
      _
    // Predicated region
    $region14: #{pixel_to_position.1} parent=1 // pred_check
      _
    $region15: #{pixel_to_position.1} parent=1 // pred_check_branch
      %263 = sbr.rel (0) target = $region17
    $region16: #{pixel_to_position.1} parent=1 // pred_region
      %264 = dma.done [#allocation3], 128
    $region17: #{pixel_to_position.1} parent=1 // pred_fallthru
      _
    %265 = vsyncpa [#allocation3], 1

</llo_original>
